<compile_context>
chip_gen: v7x
topology: tpu7x:2x2x1
jax: 0.10.0
libtpu: 0.0.40
codegen_flags: <defaults>
</compile_context>

<pallas_src>
import jax
import jax.numpy as jnp
from jax.experimental import pallas as pl
from jax.experimental.pallas import tpu as pltpu


def _caddtable_kernel(x_ref, w_ref, b_ref, o_ref):
    """One grid step: collapsed 1x1-conv for one (batch-group, spatial tile).

    x_ref : (nb*C_in,  TS)       input rows  x spatial tile (lanes = spatial)
    w_ref : (nb*C_out, nb*C_in)  block-diagonal summed branch weights
    b_ref : (nb*C_out, 1)        summed branch biases (tiled per batch row)
    o_ref : (nb*C_out, TS)       output rows x spatial tile (lane-dense)
    """
    o_ref[...] = (
        jnp.dot(
            w_ref[...],
            x_ref[...],
            preferred_element_type=jnp.float32,
            precision=jax.lax.Precision.HIGHEST,
        )
        + b_ref[...]
    ).astype(o_ref.dtype)


def _pick_batch_fold(n, c_in):
    """Largest nb dividing N with nb*C_in a multiple of 8 (full f32 sublanes)
    and small enough that the block-diagonal matmul stays tiny."""
    best = 1
    for nb in range(1, n + 1):
        if n % nb == 0 and nb * c_in <= 64 and (nb * c_in) % 8 == 0:
            best = nb
    return best


def caddtable_forward(x_nchw, weights, biases, *, lane_tile=65536):
    """sum_k Conv2d_1x1(W_k, b_k)(x), computed in one Pallas kernel.

    x_nchw : (N, C_in, H, W) float32
    weights: (K, C_in, C_out) float32  (torch (C_out, C_in, 1, 1) transposed)
    biases : (K, C_out) float32
    returns: (N, C_out, H, W) float32
    """
    N, C_in, H, W = x_nchw.shape
    K, _, C_out = weights.shape
    S = H * W

    # Exact algebraic collapse of the K linear branches (caddtable sum).
    w_sum_t = jnp.sum(weights, axis=0).T                 # (C_out, C_in)
    b_sum = jnp.sum(biases, axis=0)                      # (C_out,)

    # Fold `nb` batch images into the sublane axis so input vregs are full.
    nb = _pick_batch_fold(N, C_in)
    G = N // nb                                          # batch groups
    rows_in, rows_out = nb * C_in, nb * C_out

    # Block-diagonal weight / tiled bias handle the folded rows in one dot.
    w_bd = jnp.kron(jnp.eye(nb, dtype=w_sum_t.dtype), w_sum_t)  # (rows_out, rows_in)
    b_bd = jnp.tile(b_sum, nb).reshape(rows_out, 1)             # (rows_out, 1)

    # NCHW -> (G, nb*C_in, H*W): pure contiguous reshape, no transpose,
    # no extra HBM pass.
    x_flat = x_nchw.reshape(G, rows_in, S)

    # Spatial lane tile:
    #  * multiple of 128 (lane-dense, unmasked stores),
    #  * <= ceil(S/2) rounded to 128 so there are >= 2 parallel spatial
    #    steps (both v7x TensorCores get work),
    #  * <= a double-buffered VMEM budget safe for v7x's 64 MiB,
    #  * <= caller lane_tile.
    half_s = (S + 1) // 2
    half_s_128 = ((half_s + 127) // 128) * 128
    vmem_budget = 24 * 1024 * 1024                       # x + out tiles, 2x buffered
    bytes_per_lane = (rows_in + rows_out) * 4 * 2
    vmem_ts = max(128, (vmem_budget // bytes_per_lane) // 128 * 128)
    ts = min(lane_tile, half_s_128, vmem_ts)
    ts = max(128, (ts // 128) * 128)                     # explicit multiple of 128

    # Ragged final spatial tile (if S % ts != 0) is handled by Pallas with
    # masked stores; no wrapper-side pad or post-call slice.
    grid = (G, pl.cdiv(S, ts))

    out_flat = pl.pallas_call(
        _caddtable_kernel,
        out_shape=jax.ShapeDtypeStruct((G, rows_out, S), x_nchw.dtype),
        grid_spec=pltpu.PrefetchScalarGridSpec(
            num_scalar_prefetch=0,
            grid=grid,
            in_specs=[
                # batch-group squeezed; folded rows full; spatial tiled on lanes
                pl.BlockSpec((None, rows_in, ts), lambda g, s: (g, 0, s)),
                # tiny summed weights/bias: fully VMEM-resident, same block always
                pl.BlockSpec((rows_out, rows_in), lambda g, s: (0, 0)),
                pl.BlockSpec((rows_out, 1), lambda g, s: (0, 0)),
            ],
            out_specs=pl.BlockSpec((None, rows_out, ts), lambda g, s: (g, 0, s)),
        ),
        compiler_params=pltpu.CompilerParams(
            # No reduction axis -> both grid axes independent (megacore).
            dimension_semantics=("parallel", "parallel"),
            # <= ~48 MiB keeps double-buffering headroom on v7x's 64 MiB
            # physical VMEM while still well above the v5e 16 MiB default.
            vmem_limit_bytes=48 * 1024 * 1024,
        ),
    )(x_flat, w_bd, b_bd)

    return out_flat.reshape(N, C_out, H, W)


if __name__ == "__main__":
    # Small deterministic setup: batch=2, C_in=4, spatial=16x16, C_out=8,
    # K=3 branches in the add-table.
    N, C_in, H, W = 2, 4, 16, 16
    C_out, K = 8, 3

    key = jax.random.PRNGKey(0)
    kx, kw, kb = jax.random.split(key, 3)

    x = jax.random.normal(kx, (N, C_in, H, W), dtype=jnp.float32)
    weights = 0.1 * jax.random.normal(kw, (K, C_in, C_out), dtype=jnp.float32)
    biases = 0.1 * jax.random.normal(kb, (K, C_out), dtype=jnp.float32)

    fwd = jax.jit(caddtable_forward)
    out = jax.block_until_ready(fwd(x, weights, biases))

    # Pure-JAX reference of the caddtable semantics: sum_k branch_k(x).
    x_flat = x.reshape(N, C_in, H * W)
    ref = sum(
        jnp.einsum("ncs,co->nos", x_flat, weights[k]) + biases[k][None, :, None]
        for k in range(K)
    ).reshape(N, C_out, H, W)

    assert out.shape == (N, C_out, H, W)
    # Tolerance covers MXU f32 rounding and reassociation of the K-branch sum.
    assert jnp.allclose(out, ref, atol=1e-3, rtol=1e-3), "mismatch vs reference"
    print("KERNEL_OK")
</pallas_src>

<mosaic_0001>
module attributes {stable_mosaic.version = 11 : i64} {
  func.func @_caddtable_kernel(%arg0: i32, %arg1: i32, %arg2: memref<1x8x128xf32, #tpu.memory_space<vmem>>, %arg3: memref<16x8xf32, #tpu.memory_space<vmem>>, %arg4: memref<16x1xf32, #tpu.memory_space<vmem>>, %arg5: memref<1x16x128xf32, #tpu.memory_space<vmem>>) attributes {dimension_semantics = [#tpu.dimension_semantics<parallel>, #tpu.dimension_semantics<parallel>], iteration_bounds = array<i64: 1, 2>, scalar_prefetch = 0 : i64, scratch_operands = 0 : i64, tpu.core_type = #tpu.core_type<tc>, window_params = [{transform_indices = @transform_0, window_bounds = array<i64: 1, 8, 128>}, {pipeline_mode = #tpu.pipeline_mode<synchronous>, transform_indices = @transform_1, window_bounds = array<i64: 16, 8>}, {pipeline_mode = #tpu.pipeline_mode<synchronous>, transform_indices = @transform_2, window_bounds = array<i64: 16, 1>}, {transform_indices = @transform_3, window_bounds = array<i64: 1, 16, 128>}]} {
    %c0 = arith.constant 0 : index
    %c0_0 = arith.constant 0 : index
    %0 = vector.load %arg3[%c0, %c0_0] : memref<16x8xf32, #tpu.memory_space<vmem>>, vector<16x8xf32>
    %c0_1 = arith.constant 0 : index
    %c0_2 = arith.constant 0 : index
    %c0_3 = arith.constant 0 : index
    %1 = vector.load %arg2[%c0_1, %c0_2, %c0_3] : memref<1x8x128xf32, #tpu.memory_space<vmem>>, vector<1x8x128xf32>
    %2 = vector.shape_cast %1 : vector<1x8x128xf32> to vector<8x128xf32>
    %cst = arith.constant dense<0.000000e+00> : vector<16x128xf32>
    %3 = tpu.matmul %0, %2, %cst {dimension_numbers = #tpu.dot_dimension_numbers<[1], [0], [0], [1], [0, 0, 1, 1], [], []>, precision = #tpu.contract_precision<fp32>} : vector<16x8xf32>, vector<8x128xf32>, vector<16x128xf32> -> vector<16x128xf32>
    %c0_4 = arith.constant 0 : index
    %c0_5 = arith.constant 0 : index
    %4 = vector.load %arg4[%c0_4, %c0_5] : memref<16x1xf32, #tpu.memory_space<vmem>>, vector<16x1xf32>
    %5 = vector.broadcast %4 : vector<16x1xf32> to vector<16x128xf32>
    %6 = arith.addf %3, %5 : vector<16x128xf32>
    %c0_6 = arith.constant 0 : index
    %c0_7 = arith.constant 0 : index
    %c0_8 = arith.constant 0 : index
    %7 = vector.load %arg5[%c0_6, %c0_7, %c0_8] : memref<1x16x128xf32, #tpu.memory_space<vmem>>, vector<1x16x128xf32>
    %8 = vector.shape_cast %7 : vector<1x16x128xf32> to vector<16x128xf32>
    %9 = vector.shape_cast %6 : vector<16x128xf32> to vector<1x16x128xf32>
    tpu.vector_store %arg5[%c0_6, %c0_7, %c0_8], %9 {strides = array<i32>} : memref<1x16x128xf32, #tpu.memory_space<vmem>>, vector<1x16x128xf32>,
    return
  }
  func.func @transform_0(%arg0: i32, %arg1: i32) -> (i32, i32, i32) {
    %c0_i32 = arith.constant 0 : i32
    %c0_i32_0 = arith.constant 0 : i32
    return %arg0, %c0_i32, %arg1 : i32, i32, i32
  }
  func.func @transform_1(%arg0: i32, %arg1: i32) -> (i32, i32) {
    %c0_i32 = arith.constant 0 : i32
    %c0_i32_0 = arith.constant 0 : i32
    %c0_i32_1 = arith.constant 0 : i32
    return %c0_i32, %c0_i32_0 : i32, i32
  }
  func.func @transform_2(%arg0: i32, %arg1: i32) -> (i32, i32) {
    %c0_i32 = arith.constant 0 : i32
    %c0_i32_0 = arith.constant 0 : i32
    %c0_i32_1 = arith.constant 0 : i32
    return %c0_i32, %c0_i32_0 : i32, i32
  }
  func.func @transform_3(%arg0: i32, %arg1: i32) -> (i32, i32, i32) {
    %c0_i32 = arith.constant 0 : i32
    %c0_i32_0 = arith.constant 0 : i32
    return %arg0, %c0_i32, %arg1 : i32, i32, i32
  }
}

</mosaic_0001>

<llo_original>
// kernel: tile.8
$region0: #{tile.8}
  #allocation0 [shape = 's32[1]{0}', space=sflag, size = 0x4, scoped, tag = 'scoped memory for tile.8']
  %s0 = inlined_call_operand.vmem [shape: f32[8], index: 0, kind: input, shape index: {}]
  %s1 = inlined_call_operand.vmem [shape: f32[2,8], index: 1, kind: output, shape index: {}]
  // Predicated region
  $region2: #{tile.8} parent=0 // pred_check
    _
  $region3: #{tile.8} parent=0 // pred_check_branch
    %3 = sbr.rel (0) target = $region5
  $region4: #{tile.8} parent=0 // pred_region
    _
  $region5: #{tile.8} parent=0 // pred_fallthru
    _
  %v4 = vld [vmem:[%s0] ss:$0 sm:$0xff]
  %5 = vst [vmem:[%s1] sm:$0x3] %v4

// kernel: tile.0
$region0: #{tile.0}
  %s0 = inlined_call_operand.vmem [shape: f32[2,8], index: 0, kind: input, shape index: {}]
  %s1 = inlined_call_operand.vmem [shape: f32[16,1], index: 1, kind: output, shape index: {}]
  $region1: #{tile.0} parent=0
    #allocation0 [shape = 'u8[4096]{0}', space=vmem, size = 0x1000, scoped, tag = 'scoped mem for input reshape']
    %s3 = sshllo.u32 0, 2
    %v4 = vld [vmem:[%s0] sm:%s3]
    %5 = vst [vmem:[#allocation0] sm:%s3] %v4
    %v6 = vld [vmem:[#allocation0] sm:$0x3]
    %vm7 = vcmask 7168
    %8 = vst.msk [vmem:[%s1] ss:$8 sm:$0x3] %vm7, %v6
    %v9 = vld [vmem:[#allocation0] sm:$0x3]
    %10 = vrot.lane.b32.xlu0 %v9, 127
    %v11 = vpop.permute.xlu0 %10
    %vm12 = vcmask 7168
    %s13 = scalar_lea.vmem %s1, 1
    %14 = vst.msk [vmem:[%s13] ss:$8 sm:$0x3] %vm12, %v11
    %v15 = vld [vmem:[#allocation0] sm:$0x3]
    %16 = vrot.lane.b32.xlu0 %v15, 126
    %v17 = vpop.permute.xlu0 %16
    %vm18 = vcmask 7168
    %s19 = scalar_lea.vmem %s1, 2
    %20 = vst.msk [vmem:[%s19] ss:$8 sm:$0x3] %vm18, %v17
    %v21 = vld [vmem:[#allocation0] sm:$0x3]
    %22 = vrot.lane.b32.xlu0 %v21, 125
    %v23 = vpop.permute.xlu0 %22
    %vm24 = vcmask 7168
    %s25 = scalar_lea.vmem %s1, 3
    %26 = vst.msk [vmem:[%s25] ss:$8 sm:$0x3] %vm24, %v23
    %v27 = vld [vmem:[#allocation0] sm:$0x3]
    %28 = vrot.lane.b32.xlu0 %v27, 124
    %v29 = vpop.permute.xlu0 %28
    %vm30 = vcmask 7168
    %s31 = scalar_lea.vmem %s1, 4
    %32 = vst.msk [vmem:[%s31] ss:$8 sm:$0x3] %vm30, %v29
    %v33 = vld [vmem:[#allocation0] sm:$0x3]
    %34 = vrot.lane.b32.xlu0 %v33, 123
    %v35 = vpop.permute.xlu0 %34
    %vm36 = vcmask 7168
    %s37 = scalar_lea.vmem %s1, 5
    %38 = vst.msk [vmem:[%s37] ss:$8 sm:$0x3] %vm36, %v35
    %v39 = vld [vmem:[#allocation0] sm:$0x3]
    %40 = vrot.lane.b32.xlu0 %v39, 122
    %v41 = vpop.permute.xlu0 %40
    %vm42 = vcmask 7168
    %s43 = scalar_lea.vmem %s1, 6
    %44 = vst.msk [vmem:[%s43] ss:$8 sm:$0x3] %vm42, %v41
    %v45 = vld [vmem:[#allocation0] sm:$0x3]
    %46 = vrot.lane.b32.xlu0 %v45, 121
    %v47 = vpop.permute.xlu0 %46
    %vm48 = vcmask 7168
    %s49 = scalar_lea.vmem %s1, 7
    %50 = vst.msk [vmem:[%s49] ss:$8 sm:$0x3] %vm48, %v47

// kernel: caddtable_forward.1
$region0: #{caddtable_forward.1}
  #allocation0 [shape = 'u32[]', space=smem, size = 0x4, offset = 0x4, fixed_abs, tag = 'smem constant byte address 0x4 - core index']
  #allocation1 [shape = 'u32[144,128]{1,0:T(1,128)}', space=vmem, size = 0x12000, scoped, tag = 'internal scratch']
  %s0 = inlined_call_operand.vmem [shape: f32[1,8,256], index: 0, kind: input, shape index: {}]
  %s1 = inlined_call_operand.vmem [shape: f32[16,8], index: 1, kind: input, shape index: {}]
  %s2 = inlined_call_operand.vmem [shape: f32[16,1], index: 2, kind: input, shape index: {}]
  %s3 = inlined_call_operand.vmem [shape: f32[1,16,256], index: 3, kind: output, shape index: {}]
  %s4 = sld [smem:[#allocation0]]
  $region79: #{caddtable_forward.1} parent=0
    _
  %s6 = ssub.s32 1, %s4
  %s7 = scalar_select 0, %s6, %s4
  $region1: #{caddtable_forward.1} parent=0
    #allocation2 [shape = 'u8[16384]{0}', space=vmem, size = 0x4000, scoped, tag = 'output window, operand 0']
    loop: start=0, step=1, limit=4
    $region2: #{caddtable_forward.1} parent=1 // loop_pre_header
      _
    $region3: #{caddtable_forward.1} parent=1 // loop_header
      %s9 = sphi 0, %s13
      %p10 = scmp.ge.s32.totalorder %s9, 4
      %s16 = sphi 0, %s28
      %s17 = sphi 0, %s24
      %s18 = sphi 0, %s16
      %s19 = sphi 0, %s17
      %s20 = sphi 0, %s18
      %s21 = sphi 0, %s19
      %s33 = sphi 0, %s35
      %s36 = sphi 0, %s33
      %s37 = sphi 0, %s36
      %s53 = sphi 0, %s37
      %s57 = sphi 0, %s57
      %s59 = sphi 0, %s57
      %s60 = sphi 0, %s59
      %s74 = sphi 0, %s60
      %s78 = sphi 0, %s78
      %s80 = sphi 0, %s78
      %s81 = sphi 0, %s80
      %s95 = sphi 0, %s81
      %s103 = sphi 0, %s105
      %s106 = sphi 0, %s103
      %s107 = sphi 0, %s106
      %s123 = sphi 0, %s107
    $region4: #{caddtable_forward.1} parent=1 // loop_header_branch
      %12 = sbr.rel (%p10) target = $region8
    $region5: #{caddtable_forward.1} parent=1 // loop_body
      %s14 = ssub.s32 %s9, 1
      %s15 = ssub.s32 %s9, 2
      %s22 = sadd.s32 1, %s17
      %p23 = scmp.ge.s32.totalorder %s22, 2
      %s24 = scalar_select %p23, 0, %s22
      %s25 = sadd.s32 1, %s16
      %s26 = scalar_select %p23, %s25, %s16
      %p27 = scmp.ge.s32.totalorder %s26, 1
      %s28 = scalar_select %p27, 0, %s26
      %s29 = ssub.s32 %s16, %s28
      %s30 = ssub.s32 %s17, %s24
      %s31 = sor.u32 %s29, %s30
      %p32 = scmp.eq.s32.totalorder %s31, 0
      %s34 = sadd.s32 %s33, 1
      %s35 = scalar_select %p32, %s33, %s34
      %p38 = pneg %p32
      %p39 = scmp.eq.s32.totalorder %s9, 1
      %p40 = por %p38, %p39
      %p41 = scmp.ne.s32.totalorder %s33, %s36
      %p42 = scmp.eq.s32.totalorder %s9, 0
      %p43 = por %p41, %p42
      %p44 = scmp.ne.s32.totalorder %s33, %s36
      %p45 = scmp.eq.s32.totalorder %s14, 1
      %p46 = por %p44, %p45
      %p47 = scmp.ne.s32.totalorder %s36, %s37
      %p48 = scmp.eq.s32.totalorder %s14, 0
      %p49 = por %p47, %p48
      %p50 = scmp.ne.s32.totalorder %s36, %s37
      %p51 = scmp.eq.s32.totalorder %s15, 1
      %p52 = por %p50, %p51
      %p54 = scmp.ne.s32.totalorder %s37, %s53
      %p55 = scmp.eq.s32.totalorder %s15, 0
      %p56 = por %p54, %p55
      %s58 = sadd.s32 %s57, 1
      %p61 = scmp.eq.s32.totalorder %s9, 1
      %p62 = scmp.ne.s32.totalorder %s57, %s59
      %p63 = scmp.eq.s32.totalorder %s9, 0
      %p64 = por %p62, %p63
      %p65 = scmp.ne.s32.totalorder %s57, %s59
      %p66 = scmp.eq.s32.totalorder %s14, 1
      %p67 = por %p65, %p66
      %p68 = scmp.ne.s32.totalorder %s59, %s60
      %p69 = scmp.eq.s32.totalorder %s14, 0
      %p70 = por %p68, %p69
      %p71 = scmp.ne.s32.totalorder %s59, %s60
      %p72 = scmp.eq.s32.totalorder %s15, 1
      %p73 = por %p71, %p72
      %p75 = scmp.ne.s32.totalorder %s60, %s74
      %p76 = scmp.eq.s32.totalorder %s15, 0
      %p77 = por %p75, %p76
      %s79 = sadd.s32 %s78, 1
      %p82 = scmp.eq.s32.totalorder %s9, 1
      %p83 = scmp.ne.s32.totalorder %s78, %s80
      %p84 = scmp.eq.s32.totalorder %s9, 0
      %p85 = por %p83, %p84
      %p86 = scmp.ne.s32.totalorder %s78, %s80
      %p87 = scmp.eq.s32.totalorder %s14, 1
      %p88 = por %p86, %p87
      %p89 = scmp.ne.s32.totalorder %s80, %s81
      %p90 = scmp.eq.s32.totalorder %s14, 0
      %p91 = por %p89, %p90
      %p92 = scmp.ne.s32.totalorder %s80, %s81
      %p93 = scmp.eq.s32.totalorder %s15, 1
      %p94 = por %p92, %p93
      %p96 = scmp.ne.s32.totalorder %s81, %s95
      %p97 = scmp.eq.s32.totalorder %s15, 0
      %p98 = por %p96, %p97
      %s99 = ssub.s32 %s16, %s28
      %s100 = ssub.s32 %s17, %s24
      %s101 = sor.u32 %s99, %s100
      %p102 = scmp.eq.s32.totalorder %s101, 0
      %s104 = sadd.s32 %s103, 1
      %s105 = scalar_select %p102, %s103, %s104
      %p108 = pneg %p102
      %p109 = scmp.eq.s32.totalorder %s9, 1
      %p110 = por %p108, %p109
      %p111 = scmp.ne.s32.totalorder %s103, %s106
      %p112 = scmp.eq.s32.totalorder %s9, 0
      %p113 = por %p111, %p112
      %p114 = scmp.ne.s32.totalorder %s103, %s106
      %p115 = scmp.eq.s32.totalorder %s14, 1
      %p116 = por %p114, %p115
      %p117 = scmp.ne.s32.totalorder %s106, %s107
      %p118 = scmp.eq.s32.totalorder %s14, 0
      %p119 = por %p117, %p118
      %p120 = scmp.ne.s32.totalorder %s106, %s107
      %p121 = scmp.eq.s32.totalorder %s15, 1
      %p122 = por %p120, %p121
      %p124 = scmp.ne.s32.totalorder %s107, %s123
      %p125 = scmp.eq.s32.totalorder %s15, 0
      %p126 = por %p124, %p125
      %p127 = scmp.le.s32.totalorder 1, %s9
      %p128 = scmp.lt.s32.totalorder %s9, 3
      %p129 = pnand %p127, %p128
      %p130 = pneg %p129
      // Predicated region
      $region9: #{caddtable_forward.1} parent=5 // pred_check
        _
      $region10: #{caddtable_forward.1} parent=5 // pred_check_branch
        %132 = sbr.rel (%p129) target = $region12
      $region11: #{caddtable_forward.1} parent=5 // pred_region
        %s133 = ssub.s32 %s9, 1
        // Predicated region
        $region13: #{caddtable_forward.1} parent=11 // pred_check
          %p134 = pneg %p70
        $region14: #{caddtable_forward.1} parent=11 // pred_check_branch
          %136 = sbr.rel (%p134) target = $region16
        $region15: #{caddtable_forward.1} parent=11 // pred_region
          _
        $region16: #{caddtable_forward.1} parent=11 // pred_fallthru
          _
        // Predicated region
        $region17: #{caddtable_forward.1} parent=11 // pred_check
          %p137 = pneg %p91
        $region18: #{caddtable_forward.1} parent=11 // pred_check_branch
          %139 = sbr.rel (%p137) target = $region20
        $region19: #{caddtable_forward.1} parent=11 // pred_region
          _
        $region20: #{caddtable_forward.1} parent=11 // pred_fallthru
          _
      $region12: #{caddtable_forward.1} parent=5 // pred_fallthru
        _
      %p140 = scmp.lt.s32.totalorder %s9, 2
      // Predicated region
      $region21: #{caddtable_forward.1} parent=5 // pred_check
        %p141 = pneg %p140
      $region22: #{caddtable_forward.1} parent=5 // pred_check_branch
        %143 = sbr.rel (%p141) target = $region24
      $region23: #{caddtable_forward.1} parent=5 // pred_region
        // Predicated region
        $region25: #{caddtable_forward.1} parent=23 // pred_check
          %p144 = pneg %p43
        $region26: #{caddtable_forward.1} parent=23 // pred_check_branch
          %146 = sbr.rel (%p144) target = $region28
        $region27: #{caddtable_forward.1} parent=23 // pred_region
          %p147 = scmp.lt.s32.totalorder %s16, 0
          %s148 = scalar_select %p147, %s16, 0
          %p149 = scmp.lt.s32.totalorder %s17, 1
          %s150 = scalar_select %p149, %s17, 1
          %s151 = smul.addr %s148, 2
          %s152 = sadd.s32 %s150, %s151
          %s153 = smul.addr %s152, 8
          %s154 = scalar_lea.vmem %s0, %s153
        $region28: #{caddtable_forward.1} parent=23 // pred_fallthru
          _
      $region24: #{caddtable_forward.1} parent=5 // pred_fallthru
        _
      %p155 = scmp.le.s32.totalorder 1, %s9
      %p156 = scmp.lt.s32.totalorder %s9, 3
      %p157 = pnand %p155, %p156
      %p158 = pneg %p157
      // Predicated region
      $region29: #{caddtable_forward.1} parent=5 // pred_check
        _
      $region30: #{caddtable_forward.1} parent=5 // pred_check_branch
        %160 = sbr.rel (%p157) target = $region32
      $region31: #{caddtable_forward.1} parent=5 // pred_region
        %s161 = ssub.s32 %s9, 1
        %p162 = scmp.lt.s32.totalorder %s18, 0
        %s163 = scalar_select %p162, %s18, 0
        %p164 = scmp.lt.s32.totalorder %s19, 1
        %s165 = scalar_select %p164, %s19, 1
        %s166 = smul.addr %s163, 2
        %s167 = sadd.s32 %s165, %s166
        %s168 = smul.addr %s167, 8
        %s169 = scalar_lea.vmem %s0, %s168
        %p170 = pneg %p49
        %p171 = pneg %p46
        %p172 = pneg %p70
        %p173 = pneg %p67
        %p174 = pneg %p91
        %p175 = pneg %p88
        %p176 = pneg %p119
        %p177 = pneg %p116
        %s178 = sand.u32 %s106, 1
        %s179 = sand.u32 %s106, 1
        %s180 = smul.addr %s179, 16
        %s181 = scalar_lea.vmem [#allocation2], %s180
        %p182 = scmp.lt.s32.totalorder %s18, 0
        %s183 = scalar_select %p182, %s18, 0
        %p184 = scmp.lt.s32.totalorder %s19, 1
        %s185 = scalar_select %p184, %s19, 1
        %s186 = smul.addr %s183, 2
        %s187 = sadd.s32 %s185, %s186
        %s188 = smul.addr %s187, 8
        %s189 = scalar_lea.vmem %s0, %s188
        %v190 = vld [vmem:[%s1] sm:$0xff]
        %v191 = vld [vmem:[%s1 + $0x8] sm:$0xff]
        %v192 = vld [vmem:[%s189] sm:$0xff]
        %v193 = vld [vmem:[%s2] sm:$0xff]
        %v194 = vld [vmem:[%s2 + $0x8] sm:$0xff]
        %196 = vset.pattern.permute.xlu0 0
        %197 = vperm.xlu0 %196, %v193
        %v198 = vpop.permute.xlu0 %197
        %201 = vset.pattern.permute.xlu0 0
        %202 = vperm.xlu0 %201, %v194
        %v203 = vpop.permute.xlu0 %202
        %vm205 = vcmask 64512
        %v207 = vsel %vm205, %v190, 0
        %v210 = vsel %vm205, %v191, 0
        %212 = vmatprep.subr.mxu0 0.0
        %v213 = vand.u32 %v192, 4294901760
        %214 = vmatpush1.msra.mxu0 %v213
        %215 = vmatprep.subr.mxu0 0.0
        %216 = vmatpush1.msra.mxu0 0.0
        %217 = vmatprep.subr.mxu0 0.0
        %218 = vmatpush1.msra.mxu0 0.0
        %219 = vmatprep.subr.mxu0 0.0
        %220 = vmatpush1.msra.mxu0 0.0
        %221 = vmatprep.subr.mxu0 0.0
        %222 = vmatpush1.msra.mxu0 0.0
        %223 = vmatprep.subr.mxu0 0.0
        %224 = vmatpush1.msra.mxu0 0.0
        %225 = vmatprep.subr.mxu0 0.0
        %226 = vmatpush1.msra.mxu0 0.0
        %227 = vmatprep.subr.mxu0 0.0
        %228 = vmatpush1.msra.mxu0 0.0
        %229 = vmatprep.subr.mxu0 0.0
        %230 = vmatpush1.msra.mxu0 0.0
        %231 = vmatprep.subr.mxu0 0.0
        %232 = vmatpush1.msra.mxu0 0.0
        %233 = vmatprep.subr.mxu0 0.0
        %234 = vmatpush1.msra.mxu0 0.0
        %235 = vmatprep.subr.mxu0 0.0
        %236 = vmatpush1.msra.mxu0 0.0
        %237 = vmatprep.subr.mxu0 0.0
        %238 = vmatpush1.msra.mxu0 0.0
        %239 = vmatprep.subr.mxu0 0.0
        %240 = vmatpush1.msra.mxu0 0.0
        %241 = vmatprep.subr.mxu0 0.0
        %242 = vmatpush1.msra.mxu0 0.0
        %243 = vmatprep.subr.mxu0 0.0
        %244 = vmatpush1.msra.mxu0 0.0
        %245 = vmatprep.subr.mxu0 0.0
        %246 = vmatpush1.msra.mxu0 0.0
        %247 = vmatprep.subr.mxu0 0.0
        %248 = vmatpush1.msra.mxu0 0.0
        %249 = vmatprep.subr.mxu0 0.0
        %250 = vmatpush1.msra.mxu0 0.0
        %251 = vmatprep.subr.mxu0 0.0
        %252 = vmatpush1.msra.mxu0 0.0
        %253 = vmatprep.subr.mxu0 0.0
        %254 = vmatpush1.msra.mxu0 0.0
        %255 = vmatprep.subr.mxu0 0.0
        %256 = vmatpush1.msra.mxu0 0.0
        %257 = vmatprep.subr.mxu0 0.0
        %258 = vmatpush1.msra.mxu0 0.0
        %259 = vmatprep.subr.mxu0 0.0
        %260 = vmatpush1.msra.mxu0 0.0
        %261 = vmatprep.subr.mxu0 0.0
        %262 = vmatpush1.msra.mxu0 0.0
        %263 = vmatprep.subr.mxu0 0.0
        %264 = vmatpush1.msra.mxu0 0.0
        %265 = vmatprep.subr.mxu0 0.0
        %266 = vmatpush1.msra.mxu0 0.0
        %267 = vmatprep.subr.mxu0 0.0
        %268 = vmatpush1.msra.mxu0 0.0
        %269 = vmatprep.subr.mxu0 0.0
        %270 = vmatpush1.msra.mxu0 0.0
        %271 = vmatprep.subr.mxu0 0.0
        %272 = vmatpush1.msra.mxu0 0.0
        %273 = vmatprep.subr.mxu0 0.0
        %274 = vmatpush1.msra.mxu0 0.0
        %275 = vmatprep.subr.mxu0 0.0
        %276 = vmatpush1.msra.mxu0 0.0
        %277 = vmatprep.mubr.f32.mxu0 0.0
        %v278 = vand.u32 %v207, 4294901760
        %v279 = vsub.f32 %v207, %v278
        %v280 = vand.u32 %v279, 4294901760
        %v281 = vsub.f32 %v279, %v280
        %v282 = vand.u32 %v281, 4294901760
        %283 = vmatmul.mubr.f32.gmra.mrb[0].mxu0 %v282
        %v284 = vpop.f32.mrb[0].mxu0
        %v285 = vadd.f32 %v198, %v284
        %v286 = vpop.f32.mrb[0].mxu0
        %287 = vmatprep.mubr.f32.mxu0 0.0
        %v288 = vand.u32 %v210, 4294901760
        %v289 = vsub.f32 %v210, %v288
        %v290 = vand.u32 %v289, 4294901760
        %v291 = vsub.f32 %v289, %v290
        %v292 = vand.u32 %v291, 4294901760
        %293 = vmatmul.mubr.f32.gmra.mrb[0].mxu0 %v292
        %v294 = vpop.f32.mrb[0].mxu0
        %v295 = vadd.f32 %v203, %v294
        %v296 = vpop.f32.mrb[0].mxu0
        %297 = vdwg.mxu0
        %298 = vmatprep.subr.mxu0 0.0
        %v299 = vand.u32 %v192, 4294901760
        %v300 = vsub.f32 %v192, %v299
        %v301 = vand.u32 %v300, 4294901760
        %v302 = vsub.f32 %v300, %v301
        %v303 = vand.u32 %v302, 4294901760
        %304 = vmatpush1.msra.mxu0 %v303
        %305 = vmatprep.subr.mxu0 0.0
        %306 = vmatpush1.msra.mxu0 0.0
        %307 = vmatprep.subr.mxu0 0.0
        %308 = vmatpush1.msra.mxu0 0.0
        %309 = vmatprep.subr.mxu0 0.0
        %310 = vmatpush1.msra.mxu0 0.0
        %311 = vmatprep.subr.mxu0 0.0
        %312 = vmatpush1.msra.mxu0 0.0
        %313 = vmatprep.subr.mxu0 0.0
        %314 = vmatpush1.msra.mxu0 0.0
        %315 = vmatprep.subr.mxu0 0.0
        %316 = vmatpush1.msra.mxu0 0.0
        %317 = vmatprep.subr.mxu0 0.0
        %318 = vmatpush1.msra.mxu0 0.0
        %319 = vmatprep.subr.mxu0 0.0
        %320 = vmatpush1.msra.mxu0 0.0
        %321 = vmatprep.subr.mxu0 0.0
        %322 = vmatpush1.msra.mxu0 0.0
        %323 = vmatprep.subr.mxu0 0.0
        %324 = vmatpush1.msra.mxu0 0.0
        %325 = vmatprep.subr.mxu0 0.0
        %326 = vmatpush1.msra.mxu0 0.0
        %327 = vmatprep.subr.mxu0 0.0
        %328 = vmatpush1.msra.mxu0 0.0
        %329 = vmatprep.subr.mxu0 0.0
        %330 = vmatpush1.msra.mxu0 0.0
        %331 = vmatprep.subr.mxu0 0.0
        %332 = vmatpush1.msra.mxu0 0.0
        %333 = vmatprep.subr.mxu0 0.0
        %334 = vmatpush1.msra.mxu0 0.0
        %335 = vmatprep.subr.mxu0 0.0
        %336 = vmatpush1.msra.mxu0 0.0
        %337 = vmatprep.subr.mxu0 0.0
        %338 = vmatpush1.msra.mxu0 0.0
        %339 = vmatprep.subr.mxu0 0.0
        %340 = vmatpush1.msra.mxu0 0.0
        %341 = vmatprep.subr.mxu0 0.0
        %342 = vmatpush1.msra.mxu0 0.0
        %343 = vmatprep.subr.mxu0 0.0
        %344 = vmatpush1.msra.mxu0 0.0
        %345 = vmatprep.subr.mxu0 0.0
        %346 = vmatpush1.msra.mxu0 0.0
        %347 = vmatprep.subr.mxu0 0.0
        %348 = vmatpush1.msra.mxu0 0.0
        %349 = vmatprep.subr.mxu0 0.0
        %350 = vmatpush1.msra.mxu0 0.0
        %351 = vmatprep.subr.mxu0 0.0
        %352 = vmatpush1.msra.mxu0 0.0
        %353 = vmatprep.subr.mxu0 0.0
        %354 = vmatpush1.msra.mxu0 0.0
        %355 = vmatprep.subr.mxu0 0.0
        %356 = vmatpush1.msra.mxu0 0.0
        %357 = vmatprep.subr.mxu0 0.0
        %358 = vmatpush1.msra.mxu0 0.0
        %359 = vmatprep.subr.mxu0 0.0
        %360 = vmatpush1.msra.mxu0 0.0
        %361 = vmatprep.subr.mxu0 0.0
        %362 = vmatpush1.msra.mxu0 0.0
        %363 = vmatprep.subr.mxu0 0.0
        %364 = vmatpush1.msra.mxu0 0.0
        %365 = vmatprep.subr.mxu0 0.0
        %366 = vmatpush1.msra.mxu0 0.0
        %367 = vmatprep.mubr.f32.mxu0 0.0
        %v368 = vand.u32 %v207, 4294901760
        %369 = vmatmul.mubr.f32.gmra.mrb[0].mxu0 %v368
        %v370 = vpop.f32.mrb[0].mxu0
        %v371 = vadd.f32 %v285, %v370
        %v372 = vpop.f32.mrb[0].mxu0
        %373 = vmatprep.mubr.f32.mxu0 0.0
        %v374 = vand.u32 %v210, 4294901760
        %375 = vmatmul.mubr.f32.gmra.mrb[0].mxu0 %v374
        %v376 = vpop.f32.mrb[0].mxu0
        %v377 = vadd.f32 %v295, %v376
        %v378 = vpop.f32.mrb[0].mxu0
        %379 = vdwg.mxu0
        %380 = vmatprep.subr.mxu0 0.0
        %v381 = vand.u32 %v192, 4294901760
        %v382 = vsub.f32 %v192, %v381
        %383 = vmatpush1.msra.mxu0 %v382
        %384 = vmatprep.subr.mxu0 0.0
        %385 = vmatpush1.msra.mxu0 0.0
        %386 = vmatprep.subr.mxu0 0.0
        %387 = vmatpush1.msra.mxu0 0.0
        %388 = vmatprep.subr.mxu0 0.0
        %389 = vmatpush1.msra.mxu0 0.0
        %390 = vmatprep.subr.mxu0 0.0
        %391 = vmatpush1.msra.mxu0 0.0
        %392 = vmatprep.subr.mxu0 0.0
        %393 = vmatpush1.msra.mxu0 0.0
        %394 = vmatprep.subr.mxu0 0.0
        %395 = vmatpush1.msra.mxu0 0.0
        %396 = vmatprep.subr.mxu0 0.0
        %397 = vmatpush1.msra.mxu0 0.0
        %398 = vmatprep.subr.mxu0 0.0
        %399 = vmatpush1.msra.mxu0 0.0
        %400 = vmatprep.subr.mxu0 0.0
        %401 = vmatpush1.msra.mxu0 0.0
        %402 = vmatprep.subr.mxu0 0.0
        %403 = vmatpush1.msra.mxu0 0.0
        %404 = vmatprep.subr.mxu0 0.0
        %405 = vmatpush1.msra.mxu0 0.0
        %406 = vmatprep.subr.mxu0 0.0
        %407 = vmatpush1.msra.mxu0 0.0
        %408 = vmatprep.subr.mxu0 0.0
        %409 = vmatpush1.msra.mxu0 0.0
        %410 = vmatprep.subr.mxu0 0.0
        %411 = vmatpush1.msra.mxu0 0.0
        %412 = vmatprep.subr.mxu0 0.0
        %413 = vmatpush1.msra.mxu0 0.0
        %414 = vmatprep.subr.mxu0 0.0
        %415 = vmatpush1.msra.mxu0 0.0
        %416 = vmatprep.subr.mxu0 0.0
        %417 = vmatpush1.msra.mxu0 0.0
        %418 = vmatprep.subr.mxu0 0.0
        %419 = vmatpush1.msra.mxu0 0.0
        %420 = vmatprep.subr.mxu0 0.0
        %421 = vmatpush1.msra.mxu0 0.0
        %422 = vmatprep.subr.mxu0 0.0
        %423 = vmatpush1.msra.mxu0 0.0
        %424 = vmatprep.subr.mxu0 0.0
        %425 = vmatpush1.msra.mxu0 0.0
        %426 = vmatprep.subr.mxu0 0.0
        %427 = vmatpush1.msra.mxu0 0.0
        %428 = vmatprep.subr.mxu0 0.0
        %429 = vmatpush1.msra.mxu0 0.0
        %430 = vmatprep.subr.mxu0 0.0
        %431 = vmatpush1.msra.mxu0 0.0
        %432 = vmatprep.subr.mxu0 0.0
        %433 = vmatpush1.msra.mxu0 0.0
        %434 = vmatprep.subr.mxu0 0.0
        %435 = vmatpush1.msra.mxu0 0.0
        %436 = vmatprep.subr.mxu0 0.0
        %437 = vmatpush1.msra.mxu0 0.0
        %438 = vmatprep.subr.mxu0 0.0
        %439 = vmatpush1.msra.mxu0 0.0
        %440 = vmatprep.subr.mxu0 0.0
        %441 = vmatpush1.msra.mxu0 0.0
        %442 = vmatprep.subr.mxu0 0.0
        %443 = vmatpush1.msra.mxu0 0.0
        %444 = vmatprep.subr.mxu0 0.0
        %445 = vmatpush1.msra.mxu0 0.0
        %446 = vmatprep.mubr.f32.mxu0 0.0
        %v447 = vand.u32 %v207, 4294901760
        %v448 = vsub.f32 %v207, %v447
        %449 = vmatmul.mubr.f32.gmra.mrb[0].mxu0 %v448
        %v450 = vpop.f32.mrb[0].mxu0
        %v451 = vadd.f32 %v371, %v450
        %v452 = vpop.f32.mrb[0].mxu0
        %453 = vmatprep.mubr.f32.mxu0 0.0
        %v454 = vand.u32 %v210, 4294901760
        %v455 = vsub.f32 %v210, %v454
        %456 = vmatmul.mubr.f32.gmra.mrb[0].mxu0 %v455
        %v457 = vpop.f32.mrb[0].mxu0
        %v458 = vadd.f32 %v377, %v457
        %v459 = vpop.f32.mrb[0].mxu0
        %460 = vdwg.mxu0
        %461 = vmatprep.subr.mxu0 0.0
        %v462 = vand.u32 %v192, 4294901760
        %463 = vmatpush1.msra.mxu0 %v462
        %464 = vmatprep.subr.mxu0 0.0
        %465 = vmatpush1.msra.mxu0 0.0
        %466 = vmatprep.subr.mxu0 0.0
        %467 = vmatpush1.msra.mxu0 0.0
        %468 = vmatprep.subr.mxu0 0.0
        %469 = vmatpush1.msra.mxu0 0.0
        %470 = vmatprep.subr.mxu0 0.0
        %471 = vmatpush1.msra.mxu0 0.0
        %472 = vmatprep.subr.mxu0 0.0
        %473 = vmatpush1.msra.mxu0 0.0
        %474 = vmatprep.subr.mxu0 0.0
        %475 = vmatpush1.msra.mxu0 0.0
        %476 = vmatprep.subr.mxu0 0.0
        %477 = vmatpush1.msra.mxu0 0.0
        %478 = vmatprep.subr.mxu0 0.0
        %479 = vmatpush1.msra.mxu0 0.0
        %480 = vmatprep.subr.mxu0 0.0
        %481 = vmatpush1.msra.mxu0 0.0
        %482 = vmatprep.subr.mxu0 0.0
        %483 = vmatpush1.msra.mxu0 0.0
        %484 = vmatprep.subr.mxu0 0.0
        %485 = vmatpush1.msra.mxu0 0.0
        %486 = vmatprep.subr.mxu0 0.0
        %487 = vmatpush1.msra.mxu0 0.0
        %488 = vmatprep.subr.mxu0 0.0
        %489 = vmatpush1.msra.mxu0 0.0
        %490 = vmatprep.subr.mxu0 0.0
        %491 = vmatpush1.msra.mxu0 0.0
        %492 = vmatprep.subr.mxu0 0.0
        %493 = vmatpush1.msra.mxu0 0.0
        %494 = vmatprep.subr.mxu0 0.0
        %495 = vmatpush1.msra.mxu0 0.0
        %496 = vmatprep.subr.mxu0 0.0
        %497 = vmatpush1.msra.mxu0 0.0
        %498 = vmatprep.subr.mxu0 0.0
        %499 = vmatpush1.msra.mxu0 0.0
        %500 = vmatprep.subr.mxu0 0.0
        %501 = vmatpush1.msra.mxu0 0.0
        %502 = vmatprep.subr.mxu0 0.0
        %503 = vmatpush1.msra.mxu0 0.0
        %504 = vmatprep.subr.mxu0 0.0
        %505 = vmatpush1.msra.mxu0 0.0
        %506 = vmatprep.subr.mxu0 0.0
        %507 = vmatpush1.msra.mxu0 0.0
        %508 = vmatprep.subr.mxu0 0.0
        %509 = vmatpush1.msra.mxu0 0.0
        %510 = vmatprep.subr.mxu0 0.0
        %511 = vmatpush1.msra.mxu0 0.0
        %512 = vmatprep.subr.mxu0 0.0
        %513 = vmatpush1.msra.mxu0 0.0
        %514 = vmatprep.subr.mxu0 0.0
        %515 = vmatpush1.msra.mxu0 0.0
        %516 = vmatprep.subr.mxu0 0.0
        %517 = vmatpush1.msra.mxu0 0.0
        %518 = vmatprep.subr.mxu0 0.0
        %519 = vmatpush1.msra.mxu0 0.0
        %520 = vmatprep.subr.mxu0 0.0
        %521 = vmatpush1.msra.mxu0 0.0
        %522 = vmatprep.subr.mxu0 0.0
        %523 = vmatpush1.msra.mxu0 0.0
        %524 = vmatprep.subr.mxu0 0.0
        %525 = vmatpush1.msra.mxu0 0.0
        %526 = vmatprep.mubr.f32.mxu0 0.0
        %v527 = vand.u32 %v207, 4294901760
        %v528 = vsub.f32 %v207, %v527
        %v529 = vand.u32 %v528, 4294901760
        %530 = vmatmul.mubr.f32.gmra.mrb[0].mxu0 %v529
        %v531 = vpop.f32.mrb[0].mxu0
        %v532 = vadd.f32 %v451, %v531
        %v533 = vpop.f32.mrb[0].mxu0
        %534 = vmatprep.mubr.f32.mxu0 0.0
        %v535 = vand.u32 %v210, 4294901760
        %v536 = vsub.f32 %v210, %v535
        %v537 = vand.u32 %v536, 4294901760
        %538 = vmatmul.mubr.f32.gmra.mrb[0].mxu0 %v537
        %v539 = vpop.f32.mrb[0].mxu0
        %v540 = vadd.f32 %v458, %v539
        %v541 = vpop.f32.mrb[0].mxu0
        %542 = vdwg.mxu0
        %543 = vmatprep.subr.mxu0 0.0
        %v544 = vand.u32 %v192, 4294901760
        %v545 = vsub.f32 %v192, %v544
        %v546 = vand.u32 %v545, 4294901760
        %547 = vmatpush1.msra.mxu0 %v546
        %548 = vmatprep.subr.mxu0 0.0
        %549 = vmatpush1.msra.mxu0 0.0
        %550 = vmatprep.subr.mxu0 0.0
        %551 = vmatpush1.msra.mxu0 0.0
        %552 = vmatprep.subr.mxu0 0.0
        %553 = vmatpush1.msra.mxu0 0.0
        %554 = vmatprep.subr.mxu0 0.0
        %555 = vmatpush1.msra.mxu0 0.0
        %556 = vmatprep.subr.mxu0 0.0
        %557 = vmatpush1.msra.mxu0 0.0
        %558 = vmatprep.subr.mxu0 0.0
        %559 = vmatpush1.msra.mxu0 0.0
        %560 = vmatprep.subr.mxu0 0.0
        %561 = vmatpush1.msra.mxu0 0.0
        %562 = vmatprep.subr.mxu0 0.0
        %563 = vmatpush1.msra.mxu0 0.0
        %564 = vmatprep.subr.mxu0 0.0
        %565 = vmatpush1.msra.mxu0 0.0
        %566 = vmatprep.subr.mxu0 0.0
        %567 = vmatpush1.msra.mxu0 0.0
        %568 = vmatprep.subr.mxu0 0.0
        %569 = vmatpush1.msra.mxu0 0.0
        %570 = vmatprep.subr.mxu0 0.0
        %571 = vmatpush1.msra.mxu0 0.0
        %572 = vmatprep.subr.mxu0 0.0
        %573 = vmatpush1.msra.mxu0 0.0
        %574 = vmatprep.subr.mxu0 0.0
        %575 = vmatpush1.msra.mxu0 0.0
        %576 = vmatprep.subr.mxu0 0.0
        %577 = vmatpush1.msra.mxu0 0.0
        %578 = vmatprep.subr.mxu0 0.0
        %579 = vmatpush1.msra.mxu0 0.0
        %580 = vmatprep.subr.mxu0 0.0
        %581 = vmatpush1.msra.mxu0 0.0
        %582 = vmatprep.subr.mxu0 0.0
        %583 = vmatpush1.msra.mxu0 0.0
        %584 = vmatprep.subr.mxu0 0.0
        %585 = vmatpush1.msra.mxu0 0.0
        %586 = vmatprep.subr.mxu0 0.0
        %587 = vmatpush1.msra.mxu0 0.0
        %588 = vmatprep.subr.mxu0 0.0
        %589 = vmatpush1.msra.mxu0 0.0
        %590 = vmatprep.subr.mxu0 0.0
        %591 = vmatpush1.msra.mxu0 0.0
        %592 = vmatprep.subr.mxu0 0.0
        %593 = vmatpush1.msra.mxu0 0.0
        %594 = vmatprep.subr.mxu0 0.0
        %595 = vmatpush1.msra.mxu0 0.0
        %596 = vmatprep.subr.mxu0 0.0
        %597 = vmatpush1.msra.mxu0 0.0
        %598 = vmatprep.subr.mxu0 0.0
        %599 = vmatpush1.msra.mxu0 0.0
        %600 = vmatprep.subr.mxu0 0.0
        %601 = vmatpush1.msra.mxu0 0.0
        %602 = vmatprep.subr.mxu0 0.0
        %603 = vmatpush1.msra.mxu0 0.0
        %604 = vmatprep.subr.mxu0 0.0
        %605 = vmatpush1.msra.mxu0 0.0
        %606 = vmatprep.subr.mxu0 0.0
        %607 = vmatpush1.msra.mxu0 0.0
        %608 = vmatprep.subr.mxu0 0.0
        %609 = vmatpush1.msra.mxu0 0.0
        %610 = vmatprep.mubr.f32.mxu0 0.0
        %v611 = vand.u32 %v207, 4294901760
        %612 = vmatmul.mubr.f32.gmra.mrb[0].mxu0 %v611
        %v613 = vpop.f32.mrb[0].mxu0
        %v614 = vadd.f32 %v532, %v613
        %v615 = vpop.f32.mrb[0].mxu0
        %616 = vmatprep.mubr.f32.mxu0 0.0
        %v617 = vand.u32 %v210, 4294901760
        %618 = vmatmul.mubr.f32.gmra.mrb[0].mxu0 %v617
        %v619 = vpop.f32.mrb[0].mxu0
        %v620 = vadd.f32 %v540, %v619
        %v621 = vpop.f32.mrb[0].mxu0
        %622 = vdwg.mxu0
        %623 = vmatprep.subr.mxu0 0.0
        %v624 = vand.u32 %v192, 4294901760
        %625 = vmatpush1.msra.mxu0 %v624
        %626 = vmatprep.subr.mxu0 0.0
        %627 = vmatpush1.msra.mxu0 0.0
        %628 = vmatprep.subr.mxu0 0.0
        %629 = vmatpush1.msra.mxu0 0.0
        %630 = vmatprep.subr.mxu0 0.0
        %631 = vmatpush1.msra.mxu0 0.0
        %632 = vmatprep.subr.mxu0 0.0
        %633 = vmatpush1.msra.mxu0 0.0
        %634 = vmatprep.subr.mxu0 0.0
        %635 = vmatpush1.msra.mxu0 0.0
        %636 = vmatprep.subr.mxu0 0.0
        %637 = vmatpush1.msra.mxu0 0.0
        %638 = vmatprep.subr.mxu0 0.0
        %639 = vmatpush1.msra.mxu0 0.0
        %640 = vmatprep.subr.mxu0 0.0
        %641 = vmatpush1.msra.mxu0 0.0
        %642 = vmatprep.subr.mxu0 0.0
        %643 = vmatpush1.msra.mxu0 0.0
        %644 = vmatprep.subr.mxu0 0.0
        %645 = vmatpush1.msra.mxu0 0.0
        %646 = vmatprep.subr.mxu0 0.0
        %647 = vmatpush1.msra.mxu0 0.0
        %648 = vmatprep.subr.mxu0 0.0
        %649 = vmatpush1.msra.mxu0 0.0
        %650 = vmatprep.subr.mxu0 0.0
        %651 = vmatpush1.msra.mxu0 0.0
        %652 = vmatprep.subr.mxu0 0.0
        %653 = vmatpush1.msra.mxu0 0.0
        %654 = vmatprep.subr.mxu0 0.0
        %655 = vmatpush1.msra.mxu0 0.0
        %656 = vmatprep.subr.mxu0 0.0
        %657 = vmatpush1.msra.mxu0 0.0
        %658 = vmatprep.subr.mxu0 0.0
        %659 = vmatpush1.msra.mxu0 0.0
        %660 = vmatprep.subr.mxu0 0.0
        %661 = vmatpush1.msra.mxu0 0.0
        %662 = vmatprep.subr.mxu0 0.0
        %663 = vmatpush1.msra.mxu0 0.0
        %664 = vmatprep.subr.mxu0 0.0
        %665 = vmatpush1.msra.mxu0 0.0
        %666 = vmatprep.subr.mxu0 0.0
        %667 = vmatpush1.msra.mxu0 0.0
        %668 = vmatprep.subr.mxu0 0.0
        %669 = vmatpush1.msra.mxu0 0.0
        %670 = vmatprep.subr.mxu0 0.0
        %671 = vmatpush1.msra.mxu0 0.0
        %672 = vmatprep.subr.mxu0 0.0
        %673 = vmatpush1.msra.mxu0 0.0
        %674 = vmatprep.subr.mxu0 0.0
        %675 = vmatpush1.msra.mxu0 0.0
        %676 = vmatprep.subr.mxu0 0.0
        %677 = vmatpush1.msra.mxu0 0.0
        %678 = vmatprep.subr.mxu0 0.0
        %679 = vmatpush1.msra.mxu0 0.0
        %680 = vmatprep.subr.mxu0 0.0
        %681 = vmatpush1.msra.mxu0 0.0
        %682 = vmatprep.subr.mxu0 0.0
        %683 = vmatpush1.msra.mxu0 0.0
        %684 = vmatprep.subr.mxu0 0.0
        %685 = vmatpush1.msra.mxu0 0.0
        %686 = vmatprep.subr.mxu0 0.0
        %687 = vmatpush1.msra.mxu0 0.0
        %688 = vmatprep.mubr.f32.mxu0 0.0
        %v689 = vand.u32 %v207, 4294901760
        %690 = vmatmul.mubr.f32.gmra.mrb[0].mxu0 %v689
        %v691 = vpop.f32.mrb[0].mxu0
        %v692 = vadd.f32 %v614, %v691
        %v693 = vpop.f32.mrb[0].mxu0
        %694 = vmatprep.mubr.f32.mxu0 0.0
        %v695 = vand.u32 %v210, 4294901760
        %696 = vmatmul.mubr.f32.gmra.mrb[0].mxu0 %v695
        %v697 = vpop.f32.mrb[0].mxu0
        %v698 = vadd.f32 %v620, %v697
        %v699 = vpop.f32.mrb[0].mxu0
        %700 = vdwg.mxu0
        %701 = vst [vmem:[%s181] sm:$0xff] %v692
        %702 = vst [vmem:[%s181 + $0x8] sm:$0xff] %v698
        %s703 = sand.u32 %s106, 1
        %s704 = sand.u32 %s106, 1
        %s705 = smul.addr %s704, 16
        %s706 = scalar_lea.vmem [#allocation2], %s705
        // Predicated region
        $region33: #{caddtable_forward.1} parent=31 // pred_check
          %p707 = pneg %p116
        $region34: #{caddtable_forward.1} parent=31 // pred_check_branch
          %709 = sbr.rel (%p707) target = $region36
        $region35: #{caddtable_forward.1} parent=31 // pred_region
          %s710 = smul.addr %s18, 4
          %s711 = sadd.s32 %s19, %s710
          %s712 = smul.addr %s711, 8
          %s713 = scalar_lea.vmem %s3, %s712
          // Predicated region
          $region37: #{caddtable_forward.1} parent=35 // pred_check
            _
          $region38: #{caddtable_forward.1} parent=35 // pred_check_branch
            %715 = sbr.rel (0) target = $region40
          $region39: #{caddtable_forward.1} parent=35 // pred_region
            // Predicated region
            $region41: #{caddtable_forward.1} parent=39 // pred_check
              _
            $region42: #{caddtable_forward.1} parent=39 // pred_check_branch
              %717 = sbr.rel (0) target = $region44
            $region43: #{caddtable_forward.1} parent=39 // pred_region
              // Predicated region
              $region56: #{caddtable_forward.1} parent=43 // pred_check
                _
              $region57: #{caddtable_forward.1} parent=43 // pred_check_branch
                %734 = sbr.rel (0) target = $region59
              $region58: #{caddtable_forward.1} parent=43 // pred_region
                loop: start=0, step=1, limit=1
                $region60: #{caddtable_forward.1} parent=58 // loop_pre_header
                  _
                $region61: #{caddtable_forward.1} parent=58 // loop_header
                  %s736 = sphi 0, %s740
                  %p737 = scmp.ge.s32.totalorder %s736, 1
                  %s741 = sphi %s706, %s706
                  %s742 = sphi %s713, %s713
                $region62: #{caddtable_forward.1} parent=58 // loop_header_branch
                  %739 = sbr.rel (%p737) target = $region66
                $region63: #{caddtable_forward.1} parent=58 // loop_body
                  %v743 = vld [vmem:[%s741] sm:$0xff]
                  %744 = vst [vmem:[%s742] sm:$0xff] %v743
                  %v745 = vld [vmem:[%s741 + $0x8] sm:$0xff]
                  %746 = vst [vmem:[%s742 + $0x10] sm:$0xff] %v745
                $region64: #{caddtable_forward.1} parent=58 // loop_footer
                  %s740 = sadd.s32 1, %s736
                $region65: #{caddtable_forward.1} parent=58 // loop_footer_branch
                  %735 = sbr.rel target = $region61
                $region66: #{caddtable_forward.1} parent=58 // loop_exit
                  _
              $region59: #{caddtable_forward.1} parent=43 // pred_fallthru
                _
              // Predicated region
              $region67: #{caddtable_forward.1} parent=43 // pred_check
                _
              $region68: #{caddtable_forward.1} parent=43 // pred_check_branch
                %748 = sbr.rel target = $region70
              $region69: #{caddtable_forward.1} parent=43 // pred_region
                _
              $region70: #{caddtable_forward.1} parent=43 // pred_fallthru
                _
            $region44: #{caddtable_forward.1} parent=39 // pred_fallthru
              _
            // Predicated region
            $region45: #{caddtable_forward.1} parent=39 // pred_check
              _
            $region46: #{caddtable_forward.1} parent=39 // pred_check_branch
              %719 = sbr.rel target = $region48
            $region47: #{caddtable_forward.1} parent=39 // pred_region
              loop: start=0, step=1, limit=1
              $region49: #{caddtable_forward.1} parent=47 // loop_pre_header
                _
              $region50: #{caddtable_forward.1} parent=47 // loop_header
                %s722 = sphi 0, %s726
                %p723 = scmp.ge.s32.totalorder %s722, 1
                %s727 = sphi %s706, %s706
                %s728 = sphi %s713, %s713
              $region51: #{caddtable_forward.1} parent=47 // loop_header_branch
                %725 = sbr.rel (%p723) target = $region55
              $region52: #{caddtable_forward.1} parent=47 // loop_body
                %v729 = vld [vmem:[%s727] sm:$0xff]
                %730 = vst [vmem:[%s728] sm:$0xff] %v729
                %v731 = vld [vmem:[%s727 + $0x8] sm:$0xff]
                %732 = vst [vmem:[%s728 + $0x10] sm:$0xff] %v731
              $region53: #{caddtable_forward.1} parent=47 // loop_footer
                %s726 = sadd.s32 1, %s722
              $region54: #{caddtable_forward.1} parent=47 // loop_footer_branch
                %721 = sbr.rel target = $region50
              $region55: #{caddtable_forward.1} parent=47 // loop_exit
                _
            $region48: #{caddtable_forward.1} parent=39 // pred_fallthru
              _
          $region40: #{caddtable_forward.1} parent=35 // pred_fallthru
            _
          %749 = vnop
        $region36: #{caddtable_forward.1} parent=31 // pred_fallthru
          _
      $region32: #{caddtable_forward.1} parent=5 // pred_fallthru
        _
      %p750 = scmp.le.s32.totalorder 2, %s9
      // Predicated region
      $region71: #{caddtable_forward.1} parent=5 // pred_check
        %p751 = pneg %p750
      $region72: #{caddtable_forward.1} parent=5 // pred_check_branch
        %753 = sbr.rel (%p751) target = $region74
      $region73: #{caddtable_forward.1} parent=5 // pred_region
        %s754 = ssub.s32 %s9, 2
        // Predicated region
        $region75: #{caddtable_forward.1} parent=73 // pred_check
          %p755 = pneg %p122
        $region76: #{caddtable_forward.1} parent=73 // pred_check_branch
          %757 = sbr.rel (%p755) target = $region78
        $region77: #{caddtable_forward.1} parent=73 // pred_region
          %s758 = sand.u32 %s107, 1
          %s759 = sand.u32 %s107, 1
          %s760 = smul.addr %s759, 16
          %s761 = scalar_lea.vmem [#allocation2], %s760
        $region78: #{caddtable_forward.1} parent=73 // pred_fallthru
          _
      $region74: #{caddtable_forward.1} parent=5 // pred_fallthru
        _
    $region6: #{caddtable_forward.1} parent=1 // loop_footer
      %s13 = sadd.s32 1, %s9
    $region7: #{caddtable_forward.1} parent=1 // loop_footer_branch
      %8 = sbr.rel target = $region3
    $region8: #{caddtable_forward.1} parent=1 // loop_exit
      _

</llo_original>
